<compile_context>
chip_gen: v7x
topology: tpu7x:2x2x1
jax: 0.10.0
libtpu: 0.0.40
codegen_flags: <defaults>
</compile_context>

<pallas_src>
import math

import jax
import jax.numpy as jnp
from jax import lax
from jax.experimental import pallas as pl
from jax.experimental.pallas import tpu as pltpu

_INV_SQRT2 = 0.7071067811865476  # 1/sqrt(2) for the exact (erf) GELU


def _erf(x):
    """Abramowitz–Stegun 7.1.26 erf approximation (max abs error ~1.5e-7).

    Uses only abs/div/mul/add/exp/where, all of which lower in Mosaic;
    torch.nn.GELU's exact erf has no dedicated Pallas-TPU primitive."""
    ax = jnp.abs(x)
    t = 1.0 / (1.0 + 0.3275911 * ax)
    poly = t * (0.254829592 + t * (-0.284496736 + t * (1.421413741
               + t * (-1.453152027 + t * 1.061405429))))
    y = 1.0 - poly * jnp.exp(-ax * ax)
    return jnp.where(x < 0.0, -y, y)


def _se_kernel(x_ref, g_ref, w1_ref, w2_ref, o_ref):
    """One (ROWS_BLK, HW) block; row r <-> (batch r // C, channel r % C).

    x_ref:  (ROWS_BLK, HW)        input rows (streamed / pipelined)
    g_ref:  (ROWS_BLK, ROWS_BLK)  bf16 block-diagonal group matrix (1 within a batch)
    w1_ref: (ROWS_BLK, HID_P)     row r holds W1.T[r % C, :] / (H*W)   (f32)
    w2_ref: (ROWS_BLK, HID_P)     row r holds W2[r % C, :]             (f32)
    o_ref:  (ROWS_BLK, HW)
    """
    x = x_ref[...]

    # Squeeze: spatial sum over the lane axis (1/(H*W) folded into w1_ref).
    psum = jnp.sum(x.astype(jnp.float32), axis=-1, keepdims=True)        # (R, 1)

    # fc1 without reshaping the pooled vector:
    #   z[r, :] = psum[r] * W1.T[r % C, :] / HW
    #   h[r, :] = sum over rows r' of the same batch of z[r', :]
    # i.e. a single block-diagonal matmul.  G is exact in bf16; z is split
    # into bf16 hi + lo parts so the f32-accumulated result keeps ~f32
    # accuracy while using single-pass bf16 MXU passes (no f32 emulation).
    z = psum * w1_ref[...]                                                # (R, HID_P) f32
    z_hi = z.astype(jnp.bfloat16)
    z_lo = (z - z_hi.astype(jnp.float32)).astype(jnp.bfloat16)
    g = g_ref[...]
    h = (jnp.dot(g, z_hi, preferred_element_type=jnp.float32)
         + jnp.dot(g, z_lo, preferred_element_type=jnp.float32))          # (R, HID_P)

    # Exact (erf-based) GELU, matching torch.nn.GELU's default.
    # TODO(synk): gate math runs at low lane occupancy (HID << 128); packing
    # unique per-batch rows densely would need a cross-lane permute that costs
    # more than it saves at realistic H*W.
    h = 0.5 * h * (1.0 + _erf(h * _INV_SQRT2))

    # fc2 + sigmoid per row: s[r] = sigmoid( sum_m h[r, m] * W2[r % C, m] ).
    v = jnp.sum(h * w2_ref[...], axis=-1, keepdims=True)                  # (R, 1)
    s = 1.0 / (1.0 + jnp.exp(-v))

    # Excite: broadcast the per-(batch, channel) gate over the spatial lanes.
    # Multiply in the input dtype (halves VPU/cast work for bf16 inputs).
    o_ref[...] = x * s.astype(o_ref.dtype)


def _round_up(x, m):
    return (x + m - 1) // m * m


def _tpu_budgets():
    """(streaming block byte target, vmem_limit_bytes) per TPU generation."""
    try:
        kind = jax.devices()[0].device_kind.lower()
    except Exception:
        kind = ""
    if "7" in kind:                    # v7x: 64 MiB VMEM per TC, 2 TCs to feed.
        return 2 * 1024 * 1024, 40 * 1024 * 1024
    if "v5" in kind or "v6" in kind:   # 128 MiB physical VMEM (scoped default 16/32).
        return 6 * 1024 * 1024, 64 * 1024 * 1024
    return 4 * 1024 * 1024, 48 * 1024 * 1024


def _choose_batch_tile(b, c, bytes_per_row, *, target_block_bytes, max_rows):
    """Largest bt such that bt divides b, bt*c is a multiple of 8 (dense
    sublanes), bt*c <= max_rows and the x block fits the byte budget.
    Prefers bt < b so the grid has >= 2 steps (pipelining / v7x megacore)."""
    bt_unit = 8 // math.gcd(c, 8)

    def ok(bt):
        rows = bt * c
        return (b % bt == 0 and rows <= max_rows
                and rows * bytes_per_row <= target_block_bytes)

    cands = [bt for bt in range(bt_unit, b + 1, bt_unit) if ok(bt)]
    if not cands:
        return bt_unit                       # minimum legal granularity
    proper = [bt for bt in cands if bt < b]
    return max(proper) if proper else max(cands)


def se_forward(x_nchw, w1_torch, w2_torch, *, target_block_bytes=None,
               vmem_limit_bytes=None, max_rows=512):
    """SE forward: x * sigmoid(W2 @ gelu(W1 @ mean_hw(x))) per (batch, channel).

    x_nchw:   (B, C, H, W), f32 or bf16 (output keeps x's dtype; math in f32)
    w1_torch: (HID, C)  -- PyTorch Linear(oup, hid) weight, (out, in) layout
    w2_torch: (C, HID)  -- PyTorch Linear(hid, oup) weight, (out, in) layout
    """
    b, c, h, w = x_nchw.shape
    hid, c_in = w1_torch.shape
    assert c_in == c and w2_torch.shape == (c, hid)
    hw = h * w
    dtype = x_nchw.dtype
    itemsize = jnp.dtype(dtype).itemsize

    tb_default, vl_default = _tpu_budgets()
    if target_block_bytes is None:
        target_block_bytes = tb_default
    if vmem_limit_bytes is None:
        vmem_limit_bytes = vl_default

    # Fold (batch, channel) onto the sublane axis; keep the true H*W as the
    # lane axis (full-array last dim => no padding; tail stores are masked).
    bt_unit = 8 // math.gcd(c, 8)           # smallest bt with (bt*c) % 8 == 0
    bp = _round_up(b, bt_unit)              # == b unless B % bt_unit != 0 (rare)
    bt = _choose_batch_tile(bp, c, hw * itemsize,
                            target_block_bytes=target_block_bytes,
                            max_rows=max_rows)
    rows_blk = bt * c
    rows_tot = bp * c

    x_rows = x_nchw.reshape(b * c, hw)
    if bp != b:
        # Rare fallback (B not a multiple of 8/gcd(C,8)): zero-pad whole
        # batches.  Padded batches form their own groups, never contaminate
        # real ones, and are sliced off at the end.
        x_rows = jnp.pad(x_rows, ((0, (bp - b) * c), (0, 0)))

    # Per-row weight tables, DMA'd once (constant index_map, single-buffered).
    # 1/(H*W) of the average pool is folded into W1; the hidden dim is zero-
    # padded to a lane-dense multiple of 128 (exact: gelu(0) = 0 contributes 0).
    hid_p = _round_up(hid, 128)
    w1_t = jnp.asarray(w1_torch, jnp.float32).T / float(hw)           # (C, HID)
    w2_t = jnp.asarray(w2_torch, jnp.float32)                         # (C, HID)
    if hid_p != hid:
        w1_t = jnp.pad(w1_t, ((0, 0), (0, hid_p - hid)))
        w2_t = jnp.pad(w2_t, ((0, 0), (0, hid_p - hid)))
    w1_rows = jnp.tile(w1_t, (bt, 1))                                 # (ROWS_BLK, HID_P)
    w2_rows = jnp.tile(w2_t, (bt, 1))                                 # (ROWS_BLK, HID_P)

    # Block-diagonal group matrix: G[r, r'] = 1 iff rows r, r' share a batch.
    # Exactly representable in bf16 (single-pass MXU).
    ridx = jnp.arange(rows_blk, dtype=jnp.int32)
    g = (ridx[:, None] // c == ridx[None, :] // c).astype(jnp.bfloat16)

    # Resident tables: one VMEM buffer is enough (constant index_map).
    resident = {"pipeline_mode": pl.Buffered(1)} if hasattr(pl, "Buffered") else {}

    out_rows = pl.pallas_call(
        _se_kernel,
        out_shape=jax.ShapeDtypeStruct((rows_tot, hw), dtype),
        grid_spec=pltpu.PrefetchScalarGridSpec(
            num_scalar_prefetch=0,
            grid=(rows_tot // rows_blk,),
            in_specs=[
                pl.BlockSpec((rows_blk, hw), lambda i: (i, 0)),             # x (streamed)
                pl.BlockSpec((rows_blk, rows_blk), lambda i: (0, 0), **resident),
                pl.BlockSpec((rows_blk, hid_p), lambda i: (0, 0), **resident),
                pl.BlockSpec((rows_blk, hid_p), lambda i: (0, 0), **resident),
            ],
            out_specs=pl.BlockSpec((rows_blk, hw), lambda i: (i, 0)),
        ),
        compiler_params=pltpu.CompilerParams(
            dimension_semantics=("parallel",),    # batch blocks are independent
            vmem_limit_bytes=vmem_limit_bytes,
        ),
    )(x_rows, g, w1_rows, w2_rows)

    if bp != b:
        out_rows = out_rows[: b * c]
    return out_rows.reshape(b, c, h, w)


def se_reference(x_nchw, w1_torch, w2_torch):
    """Pure-JAX reference mirroring the PyTorch module."""
    y = jnp.mean(x_nchw.astype(jnp.float32), axis=(2, 3))             # (B, C)
    hh = y @ jnp.asarray(w1_torch, jnp.float32).T                     # (B, HID)
    hh = 0.5 * hh * (1.0 + lax.erf(hh * _INV_SQRT2))                  # exact GELU
    s = jax.nn.sigmoid(hh @ jnp.asarray(w2_torch, jnp.float32).T)     # (B, C)
    return (x_nchw.astype(jnp.float32) * s[:, :, None, None]).astype(x_nchw.dtype)


if __name__ == "__main__":
    # Module config: SE(inp=16, oup=4, expansion=0.25) -> hidden = int(16*0.25) = 4.
    # Input channels must equal oup (first Linear has in_features = oup).
    INP, OUP, EXPANSION = 16, 4, 0.25
    HID = int(INP * EXPANSION)
    B, C, H, W = 2, OUP, 16, 16

    key = jax.random.PRNGKey(0)
    kx, k1, k2 = jax.random.split(key, 3)

    x = jax.random.normal(kx, (B, C, H, W), dtype=jnp.float32)
    # Deterministic synthetic weights in PyTorch Linear (out, in) layout, bias=False.
    w1 = jax.random.normal(k1, (HID, OUP), dtype=jnp.float32) * 0.2    # Linear(oup, hid)
    w2 = jax.random.normal(k2, (OUP, HID), dtype=jnp.float32) * 0.2    # Linear(hid, oup)

    out = jax.jit(se_forward)(x, w1, w2)
    jax.block_until_ready(out)

    ref = se_reference(x, w1, w2)
    assert out.shape == (B, C, H, W)
    # Tolerance covers the bf16 hi/lo-split group matmul and the polynomial erf
    # (both contribute << 1e-4 absolute error on this scale).
    assert jnp.allclose(out, ref, atol=1e-4, rtol=1e-4), "mismatch vs reference"

    print("KERNEL_OK")
</pallas_src>

<mosaic_0001>
module attributes {stable_mosaic.version = 11 : i64} {
  func.func @_se_kernel(%arg0: i32, %arg1: memref<8x256xf32, #tpu.memory_space<vmem>>, %arg2: memref<8x8xbf16, #tpu.memory_space<vmem>>, %arg3: memref<8x128xf32, #tpu.memory_space<vmem>>, %arg4: memref<8x128xf32, #tpu.memory_space<vmem>>, %arg5: memref<8x256xf32, #tpu.memory_space<vmem>>) attributes {dimension_semantics = [#tpu.dimension_semantics<parallel>], iteration_bounds = array<i64: 1>, scalar_prefetch = 0 : i64, scratch_operands = 0 : i64, tpu.core_type = #tpu.core_type<tc>, window_params = [{transform_indices = @transform_0, window_bounds = array<i64: 8, 256>}, {pipeline_mode = #tpu.pipeline_mode<synchronous>, transform_indices = @transform_1, window_bounds = array<i64: 8, 8>}, {pipeline_mode = #tpu.pipeline_mode<synchronous>, transform_indices = @transform_2, window_bounds = array<i64: 8, 128>}, {pipeline_mode = #tpu.pipeline_mode<synchronous>, transform_indices = @transform_3, window_bounds = array<i64: 8, 128>}, {transform_indices = @transform_4, window_bounds = array<i64: 8, 256>}]} {
    %c0 = arith.constant 0 : index
    %c0_0 = arith.constant 0 : index
    %0 = vector.load %arg1[%c0, %c0_0] : memref<8x256xf32, #tpu.memory_space<vmem>>, vector<8x256xf32>
    %cst = arith.constant dense<0.000000e+00> : vector<8xf32>
    %1 = vector.multi_reduction <add>, %0, %cst [1] : vector<8x256xf32> to vector<8xf32>
    %2 = vector.shape_cast %1 : vector<8xf32> to vector<8x1xf32>
    %c0_1 = arith.constant 0 : index
    %c0_2 = arith.constant 0 : index
    %3 = vector.load %arg3[%c0_1, %c0_2] : memref<8x128xf32, #tpu.memory_space<vmem>>, vector<8x128xf32>
    %4 = vector.broadcast %2 : vector<8x1xf32> to vector<8x128xf32>
    %5 = arith.mulf %4, %3 : vector<8x128xf32>
    %6 = arith.truncf %5 : vector<8x128xf32> to vector<8x128xbf16>
    %7 = arith.extf %6 : vector<8x128xbf16> to vector<8x128xf32>
    %8 = arith.subf %5, %7 : vector<8x128xf32>
    %9 = arith.truncf %8 : vector<8x128xf32> to vector<8x128xbf16>
    %c0_3 = arith.constant 0 : index
    %c0_4 = arith.constant 0 : index
    %10 = vector.load %arg2[%c0_3, %c0_4] : memref<8x8xbf16, #tpu.memory_space<vmem>>, vector<8x8xbf16>
    %cst_5 = arith.constant dense<0.000000e+00> : vector<8x128xf32>
    %11 = tpu.matmul %10, %6, %cst_5 {dimension_numbers = #tpu.dot_dimension_numbers<[1], [0], [0], [1], [0, 0, 1, 1], [], []>} : vector<8x8xbf16>, vector<8x128xbf16>, vector<8x128xf32> -> vector<8x128xf32>
    %cst_6 = arith.constant dense<0.000000e+00> : vector<8x128xf32>
    %12 = tpu.matmul %10, %9, %cst_6 {dimension_numbers = #tpu.dot_dimension_numbers<[1], [0], [0], [1], [0, 0, 1, 1], [], []>} : vector<8x8xbf16>, vector<8x128xbf16>, vector<8x128xf32> -> vector<8x128xf32>
    %13 = arith.addf %11, %12 : vector<8x128xf32>
    %cst_7 = arith.constant 5.000000e-01 : f32
    %14 = vector.broadcast %cst_7 : f32 to vector<8x128xf32>
    %15 = arith.mulf %14, %13 : vector<8x128xf32>
    %cst_8 = arith.constant 0.707106769 : f32
    %16 = vector.broadcast %cst_8 : f32 to vector<8x128xf32>
    %17 = arith.mulf %13, %16 : vector<8x128xf32>
    %18 = math.absf %17 : vector<8x128xf32>
    %cst_9 = arith.constant 0.327591091 : f32
    %19 = vector.broadcast %cst_9 : f32 to vector<8x128xf32>
    %20 = arith.mulf %19, %18 : vector<8x128xf32>
    %cst_10 = arith.constant 1.000000e+00 : f32
    %21 = vector.broadcast %cst_10 : f32 to vector<8x128xf32>
    %22 = arith.addf %21, %20 : vector<8x128xf32>
    %cst_11 = arith.constant 1.000000e+00 : f32
    %23 = vector.broadcast %cst_11 : f32 to vector<8x128xf32>
    %24 = arith.divf %23, %22 : vector<8x128xf32>
    %cst_12 = arith.constant 1.06140542 : f32
    %25 = vector.broadcast %cst_12 : f32 to vector<8x128xf32>
    %26 = arith.mulf %24, %25 : vector<8x128xf32>
    %cst_13 = arith.constant -1.45315206 : f32
    %27 = vector.broadcast %cst_13 : f32 to vector<8x128xf32>
    %28 = arith.addf %27, %26 : vector<8x128xf32>
    %29 = arith.mulf %24, %28 : vector<8x128xf32>
    %cst_14 = arith.constant 1.42141378 : f32
    %30 = vector.broadcast %cst_14 : f32 to vector<8x128xf32>
    %31 = arith.addf %30, %29 : vector<8x128xf32>
    %32 = arith.mulf %24, %31 : vector<8x128xf32>
    %cst_15 = arith.constant -0.284496725 : f32
    %33 = vector.broadcast %cst_15 : f32 to vector<8x128xf32>
    %34 = arith.addf %33, %32 : vector<8x128xf32>
    %35 = arith.mulf %24, %34 : vector<8x128xf32>
    %cst_16 = arith.constant 0.254829586 : f32
    %36 = vector.broadcast %cst_16 : f32 to vector<8x128xf32>
    %37 = arith.addf %36, %35 : vector<8x128xf32>
    %38 = arith.mulf %24, %37 : vector<8x128xf32>
    %cst_17 = arith.constant 0.000000e+00 : f32
    %39 = vector.broadcast %cst_17 : f32 to vector<8x128xf32>
    %40 = arith.subf %39, %18 : vector<8x128xf32>
    %41 = arith.mulf %40, %18 : vector<8x128xf32>
    %42 = math.exp %41 : vector<8x128xf32>
    %43 = arith.mulf %38, %42 : vector<8x128xf32>
    %cst_18 = arith.constant 1.000000e+00 : f32
    %44 = vector.broadcast %cst_18 : f32 to vector<8x128xf32>
    %45 = arith.subf %44, %43 : vector<8x128xf32>
    %cst_19 = arith.constant 0.000000e+00 : f32
    %46 = vector.broadcast %cst_19 : f32 to vector<8x128xf32>
    %47 = arith.cmpf olt, %17, %46 : vector<8x128xf32>
    %cst_20 = arith.constant 0.000000e+00 : f32
    %48 = vector.broadcast %cst_20 : f32 to vector<8x128xf32>
    %49 = arith.subf %48, %45 : vector<8x128xf32>
    %50 = arith.select %47, %49, %45 : vector<8x128xi1>, vector<8x128xf32>
    %cst_21 = arith.constant 1.000000e+00 : f32
    %51 = vector.broadcast %cst_21 : f32 to vector<8x128xf32>
    %52 = arith.addf %51, %50 : vector<8x128xf32>
    %53 = arith.mulf %15, %52 : vector<8x128xf32>
    %c0_22 = arith.constant 0 : index
    %c0_23 = arith.constant 0 : index
    %54 = vector.load %arg4[%c0_22, %c0_23] : memref<8x128xf32, #tpu.memory_space<vmem>>, vector<8x128xf32>
    %55 = arith.mulf %53, %54 : vector<8x128xf32>
    %cst_24 = arith.constant dense<0.000000e+00> : vector<8xf32>
    %56 = vector.multi_reduction <add>, %55, %cst_24 [1] : vector<8x128xf32> to vector<8xf32>
    %57 = vector.shape_cast %56 : vector<8xf32> to vector<8x1xf32>
    %cst_25 = arith.constant 0.000000e+00 : f32
    %58 = vector.broadcast %cst_25 : f32 to vector<8x1xf32>
    %59 = arith.subf %58, %57 : vector<8x1xf32>
    %60 = math.exp %59 : vector<8x1xf32>
    %cst_26 = arith.constant 1.000000e+00 : f32
    %61 = vector.broadcast %cst_26 : f32 to vector<8x1xf32>
    %62 = arith.addf %61, %60 : vector<8x1xf32>
    %cst_27 = arith.constant 1.000000e+00 : f32
    %63 = vector.broadcast %cst_27 : f32 to vector<8x1xf32>
    %64 = arith.divf %63, %62 : vector<8x1xf32>
    %65 = vector.broadcast %64 : vector<8x1xf32> to vector<8x256xf32>
    %66 = arith.mulf %0, %65 : vector<8x256xf32>
    %c0_28 = arith.constant 0 : index
    %c0_29 = arith.constant 0 : index
    %67 = vector.load %arg5[%c0_28, %c0_29] : memref<8x256xf32, #tpu.memory_space<vmem>>, vector<8x256xf32>
    tpu.vector_store %arg5[%c0_28, %c0_29], %66 {strides = array<i32>} : memref<8x256xf32, #tpu.memory_space<vmem>>, vector<8x256xf32>,
    return
  }
  func.func @transform_0(%arg0: i32) -> (i32, i32) {
    %c0_i32 = arith.constant 0 : i32
    %c0_i32_0 = arith.constant 0 : i32
    return %arg0, %c0_i32 : i32, i32
  }
  func.func @transform_1(%arg0: i32) -> (i32, i32) {
    %c0_i32 = arith.constant 0 : i32
    %c0_i32_0 = arith.constant 0 : i32
    %c0_i32_1 = arith.constant 0 : i32
    return %c0_i32, %c0_i32_0 : i32, i32
  }
  func.func @transform_2(%arg0: i32) -> (i32, i32) {
    %c0_i32 = arith.constant 0 : i32
    %c0_i32_0 = arith.constant 0 : i32
    %c0_i32_1 = arith.constant 0 : i32
    return %c0_i32, %c0_i32_0 : i32, i32
  }
  func.func @transform_3(%arg0: i32) -> (i32, i32) {
    %c0_i32 = arith.constant 0 : i32
    %c0_i32_0 = arith.constant 0 : i32
    %c0_i32_1 = arith.constant 0 : i32
    return %c0_i32, %c0_i32_0 : i32, i32
  }
  func.func @transform_4(%arg0: i32) -> (i32, i32) {
    %c0_i32 = arith.constant 0 : i32
    %c0_i32_0 = arith.constant 0 : i32
    return %arg0, %c0_i32 : i32, i32
  }
}

</mosaic_0001>

<llo_original>
// kernel: se_forward.1
$region0: #{se_forward.1}
  #allocation0 [shape = 'u32[]', space=smem, size = 0x4, offset = 0x4, fixed_abs, tag = 'smem constant byte address 0x4 - core index']
  #allocation1 [shape = 'u32[144,128]{1,0:T(1,128)}', space=vmem, size = 0x12000, scoped, tag = 'internal scratch']
  %s0 = inlined_call_operand.vmem [shape: f32[8,256], index: 0, kind: input, shape index: {}]
  %s1 = inlined_call_operand.vmem [shape: bf16[8,8], index: 1, kind: input, shape index: {}]
  %s2 = inlined_call_operand.vmem [shape: f32[8,128], index: 2, kind: input, shape index: {}]
  %s3 = inlined_call_operand.vmem [shape: f32[8,128], index: 3, kind: input, shape index: {}]
  %s4 = inlined_call_operand.vmem [shape: f32[8,256], index: 4, kind: output, shape index: {}]
  %s5 = sld [smem:[#allocation0]]
  $region26: #{se_forward.1} parent=0
    _
  %s7 = ssub.s32 1, %s5
  %s8 = scalar_select 0, %s7, %s5
  // Predicated region
  $region2: #{se_forward.1} parent=0 // pred_check
    _
  $region3: #{se_forward.1} parent=0 // pred_check_branch
    %10 = sbr.rel (0) target = $region5
  $region4: #{se_forward.1} parent=0 // pred_region
    _
  $region5: #{se_forward.1} parent=0 // pred_fallthru
    _
  // Predicated region
  $region6: #{se_forward.1} parent=0 // pred_check
    _
  $region7: #{se_forward.1} parent=0 // pred_check_branch
    %12 = sbr.rel (0) target = $region9
  $region8: #{se_forward.1} parent=0 // pred_region
    _
  $region9: #{se_forward.1} parent=0 // pred_fallthru
    _
  // Predicated region
  $region10: #{se_forward.1} parent=0 // pred_check
    _
  $region11: #{se_forward.1} parent=0 // pred_check_branch
    %14 = sbr.rel (0) target = $region13
  $region12: #{se_forward.1} parent=0 // pred_region
    _
  $region13: #{se_forward.1} parent=0 // pred_fallthru
    _
  // Predicated region
  $region14: #{se_forward.1} parent=0 // pred_check
    _
  $region15: #{se_forward.1} parent=0 // pred_check_branch
    %16 = sbr.rel (0) target = $region17
  $region16: #{se_forward.1} parent=0 // pred_region
    _
  $region17: #{se_forward.1} parent=0 // pred_fallthru
    _
  %v18 = vld [vmem:[%s0] sm:$0xff]
  %v19 = vld [vmem:[%s0 + $0x8] sm:$0xff]
  %v20 = vadd.f32 %v18, %v19
  %21 = vadd.xlane.f32.xlu0 %v20
  %v22 = vpop.xlane.xlu0 %21
  %v23 = vld [vmem:[%s2] sm:$0xff]
  %v24 = vmul.f32 %v22, %v23
  %v25 = vpack.c.bf16 %v24, %v24
  %v26 = vunpack.c.l.bf16 %v25
  %v27 = vsub.f32 %v24, %v26
  %v28 = vpack.c.bf16 %v27, %v27
  %v29 = vld [vmem:[%s1] sm:$0xf]
  %vm30 = vcmask 64512
  %v32 = vsel %vm30, %v29, 0
  %vm34 = vcmask 1043456
  %v36 = vsel %vm34, %v28, 0
  %38 = vmatprep.subr.bf16.mxu0 0
  %39 = vmatpush1.bf16.msra.mxu0 %v36
  %40 = vmatprep.subr.bf16.mxu0 0
  %41 = vmatpush1.bf16.msra.mxu0 0
  %42 = vmatprep.subr.bf16.mxu0 0
  %43 = vmatpush1.bf16.msra.mxu0 0
  %44 = vmatprep.subr.bf16.mxu0 0
  %45 = vmatpush1.bf16.msra.mxu0 0
  %46 = vmatprep.subr.bf16.mxu0 0
  %47 = vmatpush1.bf16.msra.mxu0 0
  %48 = vmatprep.subr.bf16.mxu0 0
  %49 = vmatpush1.bf16.msra.mxu0 0
  %50 = vmatprep.subr.bf16.mxu0 0
  %51 = vmatpush1.bf16.msra.mxu0 0
  %52 = vmatprep.subr.bf16.mxu0 0
  %53 = vmatpush1.bf16.msra.mxu0 0
  %54 = vmatprep.subr.bf16.mxu0 0
  %55 = vmatpush1.bf16.msra.mxu0 0
  %56 = vmatprep.subr.bf16.mxu0 0
  %57 = vmatpush1.bf16.msra.mxu0 0
  %58 = vmatprep.subr.bf16.mxu0 0
  %59 = vmatpush1.bf16.msra.mxu0 0
  %60 = vmatprep.subr.bf16.mxu0 0
  %61 = vmatpush1.bf16.msra.mxu0 0
  %62 = vmatprep.subr.bf16.mxu0 0
  %63 = vmatpush1.bf16.msra.mxu0 0
  %64 = vmatprep.subr.bf16.mxu0 0
  %65 = vmatpush1.bf16.msra.mxu0 0
  %66 = vmatprep.subr.bf16.mxu0 0
  %67 = vmatpush1.bf16.msra.mxu0 0
  %68 = vmatprep.subr.bf16.mxu0 0
  %69 = vmatpush1.bf16.msra.mxu0 0
  %70 = vmatprep.mubr.bf16.mxu0 0
  %71 = vmatmul.mubr.bf16.gmra.mrb[0].mxu0 %v32
  %v72 = vpop.f32.mrb[0].mxu0
  %v73 = vadd.f32 0.0, %v72
  %v74 = vpop.f32.mrb[0].mxu0
  %v75 = vpop.f32.mrb[0].mxu0
  %v76 = vpop.f32.mrb[0].mxu0
  %77 = vdwg.mxu0
  %v79 = vsel %vm34, %v25, 0
  %81 = vmatprep.subr.bf16.mxu0 0
  %82 = vmatpush1.bf16.msra.mxu0 %v79
  %83 = vmatprep.subr.bf16.mxu0 0
  %84 = vmatpush1.bf16.msra.mxu0 0
  %85 = vmatprep.subr.bf16.mxu0 0
  %86 = vmatpush1.bf16.msra.mxu0 0
  %87 = vmatprep.subr.bf16.mxu0 0
  %88 = vmatpush1.bf16.msra.mxu0 0
  %89 = vmatprep.subr.bf16.mxu0 0
  %90 = vmatpush1.bf16.msra.mxu0 0
  %91 = vmatprep.subr.bf16.mxu0 0
  %92 = vmatpush1.bf16.msra.mxu0 0
  %93 = vmatprep.subr.bf16.mxu0 0
  %94 = vmatpush1.bf16.msra.mxu0 0
  %95 = vmatprep.subr.bf16.mxu0 0
  %96 = vmatpush1.bf16.msra.mxu0 0
  %97 = vmatprep.subr.bf16.mxu0 0
  %98 = vmatpush1.bf16.msra.mxu0 0
  %99 = vmatprep.subr.bf16.mxu0 0
  %100 = vmatpush1.bf16.msra.mxu0 0
  %101 = vmatprep.subr.bf16.mxu0 0
  %102 = vmatpush1.bf16.msra.mxu0 0
  %103 = vmatprep.subr.bf16.mxu0 0
  %104 = vmatpush1.bf16.msra.mxu0 0
  %105 = vmatprep.subr.bf16.mxu0 0
  %106 = vmatpush1.bf16.msra.mxu0 0
  %107 = vmatprep.subr.bf16.mxu0 0
  %108 = vmatpush1.bf16.msra.mxu0 0
  %109 = vmatprep.subr.bf16.mxu0 0
  %110 = vmatpush1.bf16.msra.mxu0 0
  %111 = vmatprep.subr.bf16.mxu0 0
  %112 = vmatpush1.bf16.msra.mxu0 0
  %113 = vmatprep.mubr.bf16.mxu0 0
  %114 = vmatmul.mubr.bf16.gmra.mrb[0].mxu0 %v32
  %v115 = vpop.f32.mrb[0].mxu0
  %v116 = vadd.f32 %v73, %v115
  %v117 = vpop.f32.mrb[0].mxu0
  %v118 = vpop.f32.mrb[0].mxu0
  %v119 = vpop.f32.mrb[0].mxu0
  %120 = vdwg.mxu0
  %v121 = vmul.f32 %v116, 0.5
  %v122 = vmul.f32 %v116, 0.70710677
  %v123 = vand.u32 2147483647, %v122
  %v124 = vmul.f32 %v123, 0.3275911
  %v125 = vadd.f32 %v124, 1.0
  %v126 = vrcp.pop %v125
  %v127 = vmul.f32 1.0, %v126
  %v128 = vmul.f32 %v127, 1.0614054
  %v129 = vadd.f32 %v128, -1.4531521
  %v130 = vmul.f32 %v127, %v129
  %v131 = vadd.f32 %v130, 1.4214138
  %v132 = vmul.f32 %v127, %v131
  %v133 = vadd.f32 %v132, -0.28449672
  %v134 = vmul.f32 %v127, %v133
  %v135 = vadd.f32 %v134, 0.2548296
  %v136 = vmul.f32 %v127, %v135
  %v137 = vsub.f32 0.0, %v123
  %v138 = vmul.f32 %v137, %v123
  %v139 = vmul.f32 %v138, 1.442695
  %v140 = vpow.pop %v139
  %v141 = vmul.f32 %v136, %v140
  %v142 = vsub.f32 1.0, %v141
  %vm143 = vcmp.lt.f32.partialorder %v122, 0.0
  %v144 = vsub.f32 0.0, %v142
  %v145 = vsel %vm143, %v144, %v142
  %v146 = vadd.f32 %v145, 1.0
  %v147 = vmul.f32 %v121, %v146
  %v148 = vld [vmem:[%s3] sm:$0xff]
  %v149 = vmul.f32 %v147, %v148
  %150 = vadd.xlane.f32.xlu0 %v149
  %v151 = vpop.xlane.xlu0 %150
  %v152 = vsub.f32 0.0, %v151
  %v153 = vmul.f32 %v152, 1.442695
  %v154 = vpow.pop %v153
  %v155 = vadd.f32 %v154, 1.0
  %v156 = vrcp.pop %v155
  %v157 = vmul.f32 1.0, %v156
  %v158 = vmul.f32 %v18, %v157
  %v159 = vmul.f32 %v19, %v157
  %160 = vst [vmem:[%s4] sm:$0xff] %v158
  %161 = vst [vmem:[%s4 + $0x8] sm:$0xff] %v159
  // Predicated region
  $region18: #{se_forward.1} parent=0 // pred_check
    _
  $region19: #{se_forward.1} parent=0 // pred_check_branch
    %163 = sbr.rel (0) target = $region21
  $region20: #{se_forward.1} parent=0 // pred_region
    _
  $region21: #{se_forward.1} parent=0 // pred_fallthru
    _
  // Predicated region
  $region22: #{se_forward.1} parent=0 // pred_check
    _
  $region23: #{se_forward.1} parent=0 // pred_check_branch
    %165 = sbr.rel (0) target = $region25
  $region24: #{se_forward.1} parent=0 // pred_region
    _
  $region25: #{se_forward.1} parent=0 // pred_fallthru
    _

</llo_original>
